<compile_context>
chip_gen: v5e
topology: v5e:2x2
jax: 0.10.0
libtpu: 0.0.40
codegen_flags: <defaults>
</compile_context>

<pallas_src>
import math
import numpy as np
import jax
import jax.numpy as jnp
from jax.experimental import pallas as pl
from jax.experimental.pallas import tpu as pltpu

_VMEM_LIMIT_BYTES = 40 * 1024 * 1024  # safe on v7x (64 MiB physical), ample on v5e/v6e


def _round_up(x, m):
    return ((x + m - 1) // m) * m


def _largest_divisor_tile(total, granule, cap):
    """Largest multiple of `granule` that divides `total` and is <= cap."""
    best = granule
    t = granule
    limit = min(total, cap)
    while t <= limit:
        if total % t == 0:
            best = t
        t += granule
    return best


# ---------------------------------------------------------------------------
# bf16 im2col (3x3, padding=1), tap-major then channel ordering (ky, kx, cin),
# with the K padding fused into the single concat (no second pad pass).
# ---------------------------------------------------------------------------
def _im2col_3x3(x_nhwc, k_pad=0):
    B, H, W, C = x_nhwc.shape
    xp = jnp.pad(x_nhwc.astype(jnp.bfloat16), ((0, 0), (1, 1), (1, 1), (0, 0)))
    cols = [xp[:, ky:ky + H, kx:kx + W, :] for ky in range(3) for kx in range(3)]
    if k_pad:
        cols.append(jnp.zeros((B, H, W, k_pad), jnp.bfloat16))
    patches = jnp.concatenate(cols, axis=-1)              # (B, H, W, 9*C + k_pad)
    return patches.reshape(B, H * W, 9 * C + k_pad)


# ---------------------------------------------------------------------------
# Pallas kernel: (t_hw x t_k) @ (t_k x t_n) per grid step, f32 accumulator,
# fused NoiseInjection / FusedLeakyReLU epilogue on the last K step.
# ---------------------------------------------------------------------------
def _make_conv_matmul_kernel(use_act, use_noise, act_slope=0.2):
    act_gain = math.sqrt(2.0)

    def kernel(*refs):
        p_ref, w_ref = refs[0], refs[1]
        idx = 2
        b_ref = None
        n_ref = None
        if use_act:
            b_ref = refs[idx]; idx += 1
        if use_noise:
            n_ref = refs[idx]; idx += 1
        o_ref, acc_ref = refs[idx], refs[idx + 1]

        k = pl.program_id(3)
        prod = jnp.dot(p_ref[0], w_ref[0], preferred_element_type=jnp.float32)

        @pl.when(k == 0)
        def _():
            acc_ref[...] = prod                      # direct write: no zero-init pass

        @pl.when(k > 0)
        def _():
            acc_ref[...] += prod

        @pl.when(k == pl.num_programs(3) - 1)
        def _():
            out = acc_ref[...]
            if use_noise:                            # NoiseInjection (f32, pre-cast)
                out = out + n_ref[0]                 # (t_hw, 1) broadcast across lanes
            if use_act:                              # FusedLeakyReLU
                out = out + b_ref[...]               # (1, t_n) broadcast across sublanes
                scale = jnp.where(out >= 0.0, act_gain, act_gain * act_slope)
                out = out * scale
            o_ref[0] = out.astype(o_ref.dtype)

    return kernel


def _choose_tiles(HW, K, Cout, B):
    """Lane/sublane-friendly padded extents + tiles (lanes=128, bf16 sublanes=16)."""
    Cout_p = _round_up(Cout, 128)
    K_p = _round_up(K, 128)
    HW_p = _round_up(HW, 16)

    t_n = _largest_divisor_tile(Cout_p, 128, 512)
    t_k = _largest_divisor_tile(K_p, 128, 1024)
    t_hw = _largest_divisor_tile(HW_p, 16, 2048)

    # v7x has 2 TensorCores: keep >=2 parallel grid steps when B is small.
    while (B * (HW_p // t_hw) * (Cout_p // t_n) < 2
           and t_hw > 16 and (t_hw // 2) % 16 == 0 and HW_p % (t_hw // 2) == 0):
        t_hw //= 2

    return HW_p, t_hw, K_p, t_k, Cout_p, t_n


# ---------------------------------------------------------------------------
# one StyledConv (ModulatedConv2d + optional NoiseInjection + optional act).
# x_nhwc may carry zero-padded trailing channels from a previous padded layer;
# the returned tensor keeps Cout padded to a multiple of 128 (padded channels
# are exactly zero).  Returns (out_nhwc_padded, real_Cout).
# ---------------------------------------------------------------------------
def styled_conv(x_nhwc, style, params, *, demodulate=True, use_noise=False,
                use_act=False, noise=None, out_dtype=jnp.float32):
    B, H, W, Cx = x_nhwc.shape
    _, _, Cin, Cout = params["weight"].shape            # stored as (3, 3, Cin, Cout)
    HW = H * W
    K = 9 * Cx
    scale = 1.0 / math.sqrt(Cin * 9)                    # 1 / sqrt(fan_in), real Cin

    # --- per-sample modulation / demodulation (tiny; hoisted out of the kernel) ---
    mod_scale = 1.0 / math.sqrt(style.shape[1])
    s = style @ (params["mod_w"].T * mod_scale) + params["mod_b"]        # (B, Cin)
    w = scale * params["weight"][None] * s[:, None, None, :, None]       # (B,3,3,Cin,Cout)
    if demodulate:
        demod = jax.lax.rsqrt(jnp.sum(w * w, axis=(1, 2, 3)) + 1e-8)     # (B, Cout)
        w = w * demod[:, None, None, None, :]
    if Cx != Cin:                                       # match x's zero-padded channels
        w = jnp.pad(w, ((0, 0), (0, 0), (0, 0), (0, Cx - Cin), (0, 0)))
    # already (ky,kx,cin)-major -> no transpose pass
    w_flat = w.reshape(B, K, Cout).astype(jnp.bfloat16)

    HW_p, t_hw, K_p, t_k, Cout_p, t_n = _choose_tiles(HW, K, Cout, B)

    # bf16 patches with K padding fused into the concat
    patches = _im2col_3x3(x_nhwc, k_pad=K_p - K)                         # (B, HW, K_p)
    if HW_p != HW:
        patches = jnp.pad(patches, ((0, 0), (0, HW_p - HW), (0, 0)))
    if K_p != K or Cout_p != Cout:
        w_flat = jnp.pad(w_flat, ((0, 0), (0, K_p - K), (0, Cout_p - Cout)))

    grid = (B, HW_p // t_hw, Cout_p // t_n, K_p // t_k)

    inputs = [patches, w_flat]
    in_specs = [
        pl.BlockSpec((1, t_hw, t_k), lambda b, hw, n, k: (b, hw, k)),
        pl.BlockSpec((1, t_k, t_n), lambda b, hw, n, k: (b, k, n)),
    ]
    if use_act:
        bias = jnp.pad(params["act_bias"], (0, Cout_p - Cout)).reshape(1, Cout_p)
        inputs.append(bias)
        in_specs.append(pl.BlockSpec((1, t_n), lambda b, hw, n, k: (0, n)))
    if use_noise:
        nz = (params["noise_w"][0] * noise.reshape(B, HW)).astype(jnp.float32)
        if HW_p != HW:
            nz = jnp.pad(nz, ((0, 0), (0, HW_p - HW)))
        nz = nz.reshape(B, HW_p, 1)
        inputs.append(nz)
        in_specs.append(pl.BlockSpec((1, t_hw, 1), lambda b, hw, n, k: (b, hw, 0)))

    out = pl.pallas_call(
        _make_conv_matmul_kernel(use_act, use_noise),
        out_shape=jax.ShapeDtypeStruct((B, HW_p, Cout_p), out_dtype),
        grid_spec=pltpu.PrefetchScalarGridSpec(
            num_scalar_prefetch=0,
            grid=grid,
            in_specs=in_specs,
            out_specs=pl.BlockSpec((1, t_hw, t_n),
                                   lambda b, hw, n, k: (b, hw, n)),
            scratch_shapes=[pltpu.VMEM((t_hw, t_n), jnp.float32)],
        ),
        compiler_params=pltpu.CompilerParams(
            dimension_semantics=("parallel", "parallel", "parallel", "arbitrary"),
            vmem_limit_bytes=_VMEM_LIMIT_BYTES),
    )(*inputs)

    if HW_p != HW:
        out = out[:, :HW, :]
    return out.reshape(B, H, W, Cout_p), Cout


# ---------------------------------------------------------------------------
# styleBlock forward: conv1 (act=True, noise=False) -> conv2 (noise=True).
# conv1 output stays bf16 + channel-padded; single channel slice at the end.
# ---------------------------------------------------------------------------
def style_block(x_nchw, style, params, noise):
    x = jnp.transpose(x_nchw, (0, 2, 3, 1))              # NCHW -> NHWC
    h, _ = styled_conv(x, style, params["conv1"], demodulate=True,
                       use_noise=False, use_act=True, out_dtype=jnp.bfloat16)
    h, cout2 = styled_conv(h, style, params["conv2"], demodulate=True,
                           use_noise=True, use_act=False, noise=noise,
                           out_dtype=jnp.float32)
    h = h[..., :cout2]
    return jnp.transpose(h, (0, 3, 1, 2))                # NHWC -> NCHW


# ---------------------------------------------------------------------------
# deterministic parameter init (matches the torch module's shapes / init dists;
# conv weight stored pre-transposed as (3,3,Cin,Cout))
# ---------------------------------------------------------------------------
def init_style_block_params(key, in_channel, depth, style_dim):
    ks = jax.random.split(key, 4)
    conv1 = dict(
        weight=jax.random.normal(ks[0], (3, 3, in_channel, depth), jnp.float32),
        mod_w=jax.random.normal(ks[1], (in_channel, style_dim), jnp.float32),
        mod_b=jnp.ones((in_channel,), jnp.float32),      # EqualLinear bias_init=1
        act_bias=jnp.zeros((depth,), jnp.float32),       # FusedLeakyReLU bias
    )
    conv2 = dict(
        weight=jax.random.normal(ks[2], (3, 3, depth, depth), jnp.float32),
        mod_w=jax.random.normal(ks[3], (depth, style_dim), jnp.float32),
        mod_b=jnp.ones((depth,), jnp.float32),
        noise_w=jnp.zeros((1,), jnp.float32),            # NoiseInjection weight
    )
    # TODO(synk): upsample/Blur path of StyledConv not implemented (upsample=False here).
    return {"conv1": conv1, "conv2": conv2}


# ---------------------------------------------------------------------------
# pure-JAX f32 reference (same semantics as the torch module) for validation
# ---------------------------------------------------------------------------
def _ref_styled_conv(x_nhwc, style, p, *, use_noise, use_act, noise=None):
    B, H, W, Cin = x_nhwc.shape
    Cout = p["weight"].shape[-1]
    scale = 1.0 / math.sqrt(Cin * 9)
    mod_scale = 1.0 / math.sqrt(style.shape[1])
    s = style @ (p["mod_w"].T * mod_scale) + p["mod_b"]              # (B, Cin)
    w = scale * p["weight"][None] * s[:, None, None, :, None]        # (B,3,3,Cin,Cout)
    demod = jax.lax.rsqrt(jnp.sum(w * w, axis=(1, 2, 3)) + 1e-8)
    w = w * demod[:, None, None, None, :]
    xp = jnp.pad(x_nhwc, ((0, 0), (1, 1), (1, 1), (0, 0)))
    cols = [xp[:, ky:ky + H, kx:kx + W, :] for ky in range(3) for kx in range(3)]
    patches = jnp.concatenate(cols, -1).reshape(B, H * W, 9 * Cin)
    w_flat = w.reshape(B, 9 * Cin, Cout)
    out = jnp.einsum('bpk,bkc->bpc', patches, w_flat)
    if use_noise:
        out = out + p["noise_w"][0] * noise.reshape(B, H * W, 1)
    if use_act:
        out = out + p["act_bias"][None, None, :]
        out = jnp.where(out >= 0.0, out, 0.2 * out) * math.sqrt(2.0)
    return out.reshape(B, H, W, Cout)


def ref_style_block(x_nchw, style, params, noise):
    x = jnp.transpose(x_nchw, (0, 2, 3, 1))
    h = _ref_styled_conv(x, style, params["conv1"], use_noise=False, use_act=True)
    h = _ref_styled_conv(h, style, params["conv2"], use_noise=True, use_act=False,
                         noise=noise)
    return jnp.transpose(h, (0, 3, 1, 2))


if __name__ == "__main__":
    B, Cin, depth, style_dim, H, W = 2, 4, 8, 32, 16, 16
    key = jax.random.PRNGKey(0)
    kx, ks, kn, kp = jax.random.split(key, 4)
    x = jax.random.normal(kx, (B, Cin, H, W), jnp.float32)        # NCHW like torch
    style = jax.random.normal(ks, (B, style_dim), jnp.float32)
    noise = jax.random.normal(kn, (B, 1, H, W), jnp.float32)
    params = init_style_block_params(kp, Cin, depth, style_dim)

    out = jax.block_until_ready(style_block(x, style, params, noise))
    ref = jax.block_until_ready(ref_style_block(x, style, params, noise))

    assert out.shape == (B, depth, H, W), out.shape
    out_np, ref_np = np.asarray(out), np.asarray(ref)
    max_diff = float(np.max(np.abs(out_np - ref_np)))
    # bf16 MXU inputs / bf16 conv1->conv2 chaining (f32 accumulation) -> loose tol
    if not np.allclose(out_np, ref_np, rtol=5e-2, atol=5e-2):
        raise AssertionError(f"kernel/reference mismatch, max abs diff {max_diff:e}")
    print("KERNEL_OK")
</pallas_src>

<mosaic_0001>
module attributes {stable_mosaic.version = 11 : i64} {
  func.func @kernel(%arg0: i32, %arg1: i32, %arg2: i32, %arg3: i32, %arg4: memref<1x256x128xbf16, #tpu.memory_space<vmem>>, %arg5: memref<1x128x128xbf16, #tpu.memory_space<vmem>>, %arg6: memref<1x128xf32, #tpu.memory_space<vmem>>, %arg7: memref<1x256x128xbf16, #tpu.memory_space<vmem>>, %arg8: memref<256x128xf32, #tpu.memory_space<vmem>>) attributes {dimension_semantics = [#tpu.dimension_semantics<parallel>, #tpu.dimension_semantics<parallel>, #tpu.dimension_semantics<parallel>, #tpu.dimension_semantics<arbitrary>], iteration_bounds = array<i64: 2, 1, 1, 1>, scalar_prefetch = 0 : i64, scratch_operands = 1 : i64, tpu.core_type = #tpu.core_type<tc>, window_params = [{transform_indices = @transform_0, window_bounds = array<i64: 1, 256, 128>}, {transform_indices = @transform_1, window_bounds = array<i64: 1, 128, 128>}, {transform_indices = @transform_2, window_bounds = array<i64: 1, 128>}, {transform_indices = @transform_3, window_bounds = array<i64: 1, 256, 128>}]} {
    %c0 = arith.constant 0 : index
    %c0_0 = arith.constant 0 : index
    %c0_1 = arith.constant 0 : index
    %0 = vector.load %arg4[%c0, %c0_0, %c0_1] : memref<1x256x128xbf16, #tpu.memory_space<vmem>>, vector<1x256x128xbf16>
    %1 = vector.shape_cast %0 : vector<1x256x128xbf16> to vector<256x128xbf16>
    %c0_2 = arith.constant 0 : index
    %c0_3 = arith.constant 0 : index
    %c0_4 = arith.constant 0 : index
    %2 = vector.load %arg5[%c0_2, %c0_3, %c0_4] : memref<1x128x128xbf16, #tpu.memory_space<vmem>>, vector<1x128x128xbf16>
    %3 = vector.shape_cast %2 : vector<1x128x128xbf16> to vector<128x128xbf16>
    %cst = arith.constant dense<0.000000e+00> : vector<256x128xf32>
    %4 = tpu.matmul %1, %3, %cst {dimension_numbers = #tpu.dot_dimension_numbers<[1], [0], [0], [1], [0, 0, 1, 1], [], []>} : vector<256x128xbf16>, vector<128x128xbf16>, vector<256x128xf32> -> vector<256x128xf32>
    %c0_i32 = arith.constant 0 : i32
    %5 = arith.cmpi eq, %arg3, %c0_i32 : i32
    %6 = arith.extui %5 : i1 to i32
    %c0_i32_5 = arith.constant 0 : i32
    %7 = arith.cmpi ne, %6, %c0_i32_5 : i32
    scf.if %7 {
      %c0_10 = arith.constant 0 : index
      %c0_11 = arith.constant 0 : index
      %14 = vector.load %arg8[%c0_10, %c0_11] : memref<256x128xf32, #tpu.memory_space<vmem>>, vector<256x128xf32>
      tpu.vector_store %arg8[%c0_10, %c0_11], %4 {strides = array<i32>} : memref<256x128xf32, #tpu.memory_space<vmem>>, vector<256x128xf32>,
    } else {
    }
    %c0_i32_6 = arith.constant 0 : i32
    %8 = arith.cmpi sgt, %arg3, %c0_i32_6 : i32
    %9 = arith.extui %8 : i1 to i32
    %c0_i32_7 = arith.constant 0 : i32
    %10 = arith.cmpi ne, %9, %c0_i32_7 : i32
    scf.if %10 {
      %c0_10 = arith.constant 0 : index
      %c0_11 = arith.constant 0 : index
      %14 = vector.load %arg8[%c0_10, %c0_11] : memref<256x128xf32, #tpu.memory_space<vmem>>, vector<256x128xf32>
      %15 = arith.addf %14, %4 : vector<256x128xf32>
      %c0_12 = arith.constant 0 : index
      %c0_13 = arith.constant 0 : index
      %16 = vector.load %arg8[%c0_12, %c0_13] : memref<256x128xf32, #tpu.memory_space<vmem>>, vector<256x128xf32>
      tpu.vector_store %arg8[%c0_12, %c0_13], %15 {strides = array<i32>} : memref<256x128xf32, #tpu.memory_space<vmem>>, vector<256x128xf32>,
    } else {
    }
    %c0_i32_8 = arith.constant 0 : i32
    %11 = arith.cmpi eq, %arg3, %c0_i32_8 : i32
    %12 = arith.extui %11 : i1 to i32
    %c0_i32_9 = arith.constant 0 : i32
    %13 = arith.cmpi ne, %12, %c0_i32_9 : i32
    scf.if %13 {
      %c0_10 = arith.constant 0 : index
      %c0_11 = arith.constant 0 : index
      %14 = vector.load %arg8[%c0_10, %c0_11] : memref<256x128xf32, #tpu.memory_space<vmem>>, vector<256x128xf32>
      %c0_12 = arith.constant 0 : index
      %c0_13 = arith.constant 0 : index
      %15 = vector.load %arg6[%c0_12, %c0_13] : memref<1x128xf32, #tpu.memory_space<vmem>>, vector<1x128xf32>
      %16 = vector.broadcast %15 : vector<1x128xf32> to vector<256x128xf32>
      %17 = arith.addf %14, %16 : vector<256x128xf32>
      %cst_14 = arith.constant 0.000000e+00 : f32
      %18 = vector.broadcast %cst_14 : f32 to vector<256x128xf32>
      %19 = arith.cmpf oge, %17, %18 : vector<256x128xf32>
      %cst_15 = arith.constant 1.41421354 : f32
      %cst_16 = arith.constant 0.282842726 : f32
      %20 = vector.broadcast %cst_15 : f32 to vector<256x128xf32>
      %21 = vector.broadcast %cst_16 : f32 to vector<256x128xf32>
      %22 = arith.select %19, %20, %21 : vector<256x128xi1>, vector<256x128xf32>
      %23 = arith.mulf %17, %22 : vector<256x128xf32>
      %24 = arith.truncf %23 : vector<256x128xf32> to vector<256x128xbf16>
      %c0_17 = arith.constant 0 : index
      %c0_18 = arith.constant 0 : index
      %c0_19 = arith.constant 0 : index
      %25 = vector.load %arg7[%c0_17, %c0_18, %c0_19] : memref<1x256x128xbf16, #tpu.memory_space<vmem>>, vector<1x256x128xbf16>
      %26 = vector.shape_cast %25 : vector<1x256x128xbf16> to vector<256x128xbf16>
      %27 = vector.shape_cast %24 : vector<256x128xbf16> to vector<1x256x128xbf16>
      tpu.vector_store %arg7[%c0_17, %c0_18, %c0_19], %27 {strides = array<i32>} : memref<1x256x128xbf16, #tpu.memory_space<vmem>>, vector<1x256x128xbf16>,
    } else {
    }
    return
  }
  func.func @transform_0(%arg0: i32, %arg1: i32, %arg2: i32, %arg3: i32) -> (i32, i32, i32) {
    %c0_i32 = arith.constant 0 : i32
    return %arg0, %arg1, %arg3 : i32, i32, i32
  }
  func.func @transform_1(%arg0: i32, %arg1: i32, %arg2: i32, %arg3: i32) -> (i32, i32, i32) {
    %c0_i32 = arith.constant 0 : i32
    return %arg0, %arg3, %arg2 : i32, i32, i32
  }
  func.func @transform_2(%arg0: i32, %arg1: i32, %arg2: i32, %arg3: i32) -> (i32, i32) {
    %c0_i32 = arith.constant 0 : i32
    %c0_i32_0 = arith.constant 0 : i32
    return %c0_i32, %arg2 : i32, i32
  }
  func.func @transform_3(%arg0: i32, %arg1: i32, %arg2: i32, %arg3: i32) -> (i32, i32, i32) {
    %c0_i32 = arith.constant 0 : i32
    return %arg0, %arg1, %arg2 : i32, i32, i32
  }
}

</mosaic_0001>

<llo_original>
// kernel: tpu_custom_call.1
$region0: #{tpu_custom_call.1}
  #allocation0 [shape = 'u32[]', space=smem, size = 0x4, offset = 0x4, fixed_abs, tag = 'smem constant byte address 0x4 - core index']
  #allocation1 [shape = 'u32[72,128]{1,0:T(1,128)}', space=vmem, size = 0x9000, scoped, tag = 'internal scratch']
  #allocation2 [shape = 'f32[256,128]{1,0:T(8,128)}', space=vmem, size = 0x20000, scoped, tag = 'scratch operand']
  %s0 = inlined_call_operand.hbm [shape: bf16[2,256,128], index: 0, kind: input, shape index: {}]
  %s1 = inlined_call_operand.hbm [shape: bf16[2,128,128], index: 1, kind: input, shape index: {}]
  %s2 = inlined_call_operand.vmem [shape: f32[1,128], index: 2, kind: input, shape index: {}]
  %s3 = inlined_call_operand.hbm [shape: bf16[2,256,128], index: 3, kind: output, shape index: {}]
  %s4 = sld [smem:[#allocation0]]
  $region65: #{tpu_custom_call.1} parent=0
    _
  %s6 = ssub.s32 1, %s4
  %s7 = scalar_select 0, %s6, %s4
  $region1: #{tpu_custom_call.1} parent=0
    #allocation3 [shape = 'u8[131072]{0}', space=vmem, size = 0x20000, scoped, tag = 'input window, operand 0']
    #allocation4 [shape = 's32[2]{0}', space=sflag, size = 0x8, scoped, tag = 'scoped memory for tpu_custom_call.1']
    #allocation5 [shape = 's32[2]{0}', space=sflag, size = 0x8, scoped, tag = 'scoped memory for tpu_custom_call.1']
    #allocation6 [shape = 'u8[65536]{0}', space=vmem, size = 0x10000, scoped, tag = 'input window, operand 1']
    #allocation7 [shape = 's32[2]{0}', space=sflag, size = 0x8, scoped, tag = 'scoped memory for tpu_custom_call.1']
    #allocation8 [shape = 'u8[131072]{0}', space=vmem, size = 0x20000, scoped, tag = 'output window, operand 0']
    %8 = vsyncpa [#allocation4], 0
    %s9 = scalar_lea.sflag [#allocation4], 1
    %10 = vsyncpa %s9, 0
    %11 = vsyncpa [#allocation7], 0
    %s12 = scalar_lea.sflag [#allocation7], 1
    %13 = vsyncpa %s12, 0
    %14 = vsyncpa [#allocation5], 0
    %s15 = scalar_lea.sflag [#allocation5], 1
    %16 = vsyncpa %s15, 0
    loop: start=0, step=1, limit=4
    $region2: #{tpu_custom_call.1} parent=1 // loop_pre_header
      _
    $region3: #{tpu_custom_call.1} parent=1 // loop_header
      %s18 = sphi 0, %s22
      %p19 = scmp.ge.s32.totalorder %s18, 4
      %s25 = sphi 0, %s51
      %s26 = sphi 0, %s47
      %s27 = sphi 0, %s43
      %s28 = sphi 0, %s39
      %s29 = sphi 0, %s25
      %s30 = sphi 0, %s26
      %s31 = sphi 0, %s27
      %s32 = sphi 0, %s28
      %s33 = sphi 0, %s29
      %s34 = sphi 0, %s30
      %s35 = sphi 0, %s31
      %s36 = sphi 0, %s32
      %s58 = sphi 0, %s60
      %s61 = sphi 0, %s58
      %s62 = sphi 0, %s61
      %s78 = sphi 0, %s62
      %s88 = sphi 0, %s90
      %s91 = sphi 0, %s88
      %s92 = sphi 0, %s91
      %s108 = sphi 0, %s92
      %s114 = sphi 0, %s116
      %s117 = sphi 0, %s114
      %s118 = sphi 0, %s117
      %s134 = sphi 0, %s118
      %s144 = sphi 0, %s146
      %s147 = sphi 0, %s144
      %s148 = sphi 0, %s147
      %s164 = sphi 0, %s148
    $region4: #{tpu_custom_call.1} parent=1 // loop_header_branch
      %21 = sbr.rel (%p19) target = $region8
    $region5: #{tpu_custom_call.1} parent=1 // loop_body
      %s23 = ssub.s32 %s18, 1
      %s24 = ssub.s32 %s18, 2
      %s37 = sadd.s32 1, %s28
      %p38 = scmp.ge.s32.totalorder %s37, 1
      %s39 = scalar_select %p38, 0, %s37
      %s40 = sadd.s32 1, %s27
      %s41 = scalar_select %p38, %s40, %s27
      %p42 = scmp.ge.s32.totalorder %s41, 1
      %s43 = scalar_select %p42, 0, %s41
      %s44 = sadd.s32 1, %s26
      %s45 = scalar_select %p42, %s44, %s26
      %p46 = scmp.ge.s32.totalorder %s45, 1
      %s47 = scalar_select %p46, 0, %s45
      %s48 = sadd.s32 1, %s25
      %s49 = scalar_select %p46, %s48, %s25
      %p50 = scmp.ge.s32.totalorder %s49, 2
      %s51 = scalar_select %p50, 0, %s49
      %s52 = ssub.s32 %s25, %s51
      %s53 = ssub.s32 %s26, %s47
      %s54 = sor.u32 %s52, %s53
      %s55 = ssub.s32 %s28, %s39
      %s56 = sor.u32 %s54, %s55
      %p57 = scmp.eq.s32.totalorder %s56, 0
      %s59 = sadd.s32 %s58, 1
      %s60 = scalar_select %p57, %s58, %s59
      %p63 = pneg %p57
      %p64 = scmp.eq.s32.totalorder %s18, 1
      %p65 = por %p63, %p64
      %p66 = scmp.ne.s32.totalorder %s58, %s61
      %p67 = scmp.eq.s32.totalorder %s18, 0
      %p68 = por %p66, %p67
      %p69 = scmp.ne.s32.totalorder %s58, %s61
      %p70 = scmp.eq.s32.totalorder %s23, 1
      %p71 = por %p69, %p70
      %p72 = scmp.ne.s32.totalorder %s61, %s62
      %p73 = scmp.eq.s32.totalorder %s23, 0
      %p74 = por %p72, %p73
      %p75 = scmp.ne.s32.totalorder %s61, %s62
      %p76 = scmp.eq.s32.totalorder %s24, 1
      %p77 = por %p75, %p76
      %p79 = scmp.ne.s32.totalorder %s62, %s78
      %p80 = scmp.eq.s32.totalorder %s24, 0
      %p81 = por %p79, %p80
      %s82 = ssub.s32 %s25, %s51
      %s83 = ssub.s32 %s28, %s39
      %s84 = sor.u32 %s82, %s83
      %s85 = ssub.s32 %s27, %s43
      %s86 = sor.u32 %s84, %s85
      %p87 = scmp.eq.s32.totalorder %s86, 0
      %s89 = sadd.s32 %s88, 1
      %s90 = scalar_select %p87, %s88, %s89
      %p93 = pneg %p87
      %p94 = scmp.eq.s32.totalorder %s18, 1
      %p95 = por %p93, %p94
      %p96 = scmp.ne.s32.totalorder %s88, %s91
      %p97 = scmp.eq.s32.totalorder %s18, 0
      %p98 = por %p96, %p97
      %p99 = scmp.ne.s32.totalorder %s88, %s91
      %p100 = scmp.eq.s32.totalorder %s23, 1
      %p101 = por %p99, %p100
      %p102 = scmp.ne.s32.totalorder %s91, %s92
      %p103 = scmp.eq.s32.totalorder %s23, 0
      %p104 = por %p102, %p103
      %p105 = scmp.ne.s32.totalorder %s91, %s92
      %p106 = scmp.eq.s32.totalorder %s24, 1
      %p107 = por %p105, %p106
      %p109 = scmp.ne.s32.totalorder %s92, %s108
      %p110 = scmp.eq.s32.totalorder %s24, 0
      %p111 = por %p109, %p110
      %s112 = ssub.s32 %s27, %s43
      %p113 = scmp.eq.s32.totalorder %s112, 0
      %s115 = sadd.s32 %s114, 1
      %s116 = scalar_select %p113, %s114, %s115
      %p119 = pneg %p113
      %p120 = scmp.eq.s32.totalorder %s18, 1
      %p121 = por %p119, %p120
      %p122 = scmp.ne.s32.totalorder %s114, %s117
      %p123 = scmp.eq.s32.totalorder %s18, 0
      %p124 = por %p122, %p123
      %p125 = scmp.ne.s32.totalorder %s114, %s117
      %p126 = scmp.eq.s32.totalorder %s23, 1
      %p127 = por %p125, %p126
      %p128 = scmp.ne.s32.totalorder %s117, %s118
      %p129 = scmp.eq.s32.totalorder %s23, 0
      %p130 = por %p128, %p129
      %p131 = scmp.ne.s32.totalorder %s117, %s118
      %p132 = scmp.eq.s32.totalorder %s24, 1
      %p133 = por %p131, %p132
      %p135 = scmp.ne.s32.totalorder %s118, %s134
      %p136 = scmp.eq.s32.totalorder %s24, 0
      %p137 = por %p135, %p136
      %s138 = ssub.s32 %s25, %s51
      %s139 = ssub.s32 %s26, %s47
      %s140 = sor.u32 %s138, %s139
      %s141 = ssub.s32 %s27, %s43
      %s142 = sor.u32 %s140, %s141
      %p143 = scmp.eq.s32.totalorder %s142, 0
      %s145 = sadd.s32 %s144, 1
      %s146 = scalar_select %p143, %s144, %s145
      %p149 = pneg %p143
      %p150 = scmp.eq.s32.totalorder %s18, 1
      %p151 = por %p149, %p150
      %p152 = scmp.ne.s32.totalorder %s144, %s147
      %p153 = scmp.eq.s32.totalorder %s18, 0
      %p154 = por %p152, %p153
      %p155 = scmp.ne.s32.totalorder %s144, %s147
      %p156 = scmp.eq.s32.totalorder %s23, 1
      %p157 = por %p155, %p156
      %p158 = scmp.ne.s32.totalorder %s147, %s148
      %p159 = scmp.eq.s32.totalorder %s23, 0
      %p160 = por %p158, %p159
      %p161 = scmp.ne.s32.totalorder %s147, %s148
      %p162 = scmp.eq.s32.totalorder %s24, 1
      %p163 = por %p161, %p162
      %p165 = scmp.ne.s32.totalorder %s148, %s164
      %p166 = scmp.eq.s32.totalorder %s24, 0
      %p167 = por %p165, %p166
      %p168 = scmp.le.s32.totalorder 1, %s18
      %p169 = scmp.lt.s32.totalorder %s18, 3
      %p170 = pnand %p168, %p169
      %p171 = pneg %p170
      // Predicated region
      $region9: #{tpu_custom_call.1} parent=5 // pred_check
        _
      $region10: #{tpu_custom_call.1} parent=5 // pred_check_branch
        %173 = sbr.rel (%p170) target = $region12
      $region11: #{tpu_custom_call.1} parent=5 // pred_region
        %s174 = ssub.s32 %s18, 1
        // Predicated region
        $region13: #{tpu_custom_call.1} parent=11 // pred_check
          %p175 = pneg %p130
        $region14: #{tpu_custom_call.1} parent=11 // pred_check_branch
          %177 = sbr.rel (%p175) target = $region16
        $region15: #{tpu_custom_call.1} parent=11 // pred_region
          %p178 = scmp.lt.s32.totalorder %s31, 0
          %s179 = scalar_select %p178, %s31, 0
          %s180 = scalar_lea.vmem %s2, %s179
        $region16: #{tpu_custom_call.1} parent=11 // pred_fallthru
          _
      $region12: #{tpu_custom_call.1} parent=5 // pred_fallthru
        _
      %p181 = scmp.lt.s32.totalorder %s18, 2
      // Predicated region
      $region17: #{tpu_custom_call.1} parent=5 // pred_check
        %p182 = pneg %p181
      $region18: #{tpu_custom_call.1} parent=5 // pred_check_branch
        %184 = sbr.rel (%p182) target = $region20
      $region19: #{tpu_custom_call.1} parent=5 // pred_region
        // Predicated region
        $region21: #{tpu_custom_call.1} parent=19 // pred_check
          %p185 = pneg %p68
        $region22: #{tpu_custom_call.1} parent=19 // pred_check_branch
          %187 = sbr.rel (%p185) target = $region24
        $region23: #{tpu_custom_call.1} parent=19 // pred_region
          %s188 = sand.u32 %s58, 1
          %s189 = scalar_lea.sflag [#allocation4], %s188
          %s190 = sand.u32 %s58, 1
          %s191 = smul.addr %s190, 128
          %s192 = scalar_lea.vmem [#allocation3], %s191
          %s193 = smul.u32 32, %s26
          %195 = vsyncadd %s189, 0
          %s196 = sadd.s32 %s28, %s193
          %s197 = smul.addr %s25, 32
          %s198 = sadd.s32 %s196, %s197
          %s199 = smul.addr %s198, 4
          %s200 = scalar_lea.hbm %s0, %s199
          %s201 = sshll.u32 %s200, 4
          %s202 = int_to_ptr.hbm [resolvable:$true] %s201
          %s203 = sshll.u32 %s192, 4
          %s204 = int_to_ptr.vmem [resolvable:$true] %s203
          %209 = dma.hbm_to_vmem [thread:$0]  %s202, 2048, %s204, %s189, 64, 64, 4
        $region24: #{tpu_custom_call.1} parent=19 // pred_fallthru
          _
        // Predicated region
        $region25: #{tpu_custom_call.1} parent=19 // pred_check
          %p210 = pneg %p98
        $region26: #{tpu_custom_call.1} parent=19 // pred_check_branch
          %212 = sbr.rel (%p210) target = $region28
        $region27: #{tpu_custom_call.1} parent=19 // pred_region
          %s213 = sand.u32 %s88, 1
          %s214 = scalar_lea.sflag [#allocation7], %s213
          %s215 = sand.u32 %s88, 1
          %s216 = smul.addr %s215, 64
          %s217 = scalar_lea.vmem [#allocation6], %s216
          %s218 = smul.u32 16, %s28
          %220 = vsyncadd %s214, 0
          %s221 = sadd.s32 %s27, %s218
          %s222 = smul.addr %s25, 16
          %s223 = sadd.s32 %s221, %s222
          %s224 = smul.addr %s223, 4
          %s225 = scalar_lea.hbm %s1, %s224
          %s226 = sshll.u32 %s225, 4
          %s227 = int_to_ptr.hbm [resolvable:$true] %s226
          %s228 = sshll.u32 %s217, 4
          %s229 = int_to_ptr.vmem [resolvable:$true] %s228
          %234 = dma.hbm_to_vmem [thread:$0]  %s227, 1024, %s229, %s214, 64, 64, 4
        $region28: #{tpu_custom_call.1} parent=19 // pred_fallthru
          _
      $region20: #{tpu_custom_call.1} parent=5 // pred_fallthru
        _
      %p235 = scmp.le.s32.totalorder 1, %s18
      %p236 = scmp.lt.s32.totalorder %s18, 3
      %p237 = pnand %p235, %p236
      %p238 = pneg %p237
      // Predicated region
      $region29: #{tpu_custom_call.1} parent=5 // pred_check
        _
      $region30: #{tpu_custom_call.1} parent=5 // pred_check_branch
        %240 = sbr.rel (%p237) target = $region32
      $region31: #{tpu_custom_call.1} parent=5 // pred_region
        %s241 = ssub.s32 %s18, 1
        %s242 = sand.u32 %s61, 1
        %s243 = scalar_lea.sflag [#allocation4], %s242
        %s244 = sand.u32 %s61, 1
        %s245 = smul.addr %s244, 128
        %s246 = scalar_lea.vmem [#allocation3], %s245
        // Predicated region
        $region33: #{tpu_custom_call.1} parent=31 // pred_check
          %p247 = pneg %p74
        $region34: #{tpu_custom_call.1} parent=31 // pred_check_branch
          %249 = sbr.rel (%p247) target = $region36
        $region35: #{tpu_custom_call.1} parent=31 // pred_region
          %251 = dma.done %s243, 2048
        $region36: #{tpu_custom_call.1} parent=31 // pred_fallthru
          _
        %s252 = sand.u32 %s91, 1
        %s253 = scalar_lea.sflag [#allocation7], %s252
        %s254 = sand.u32 %s91, 1
        %s255 = smul.addr %s254, 64
        %s256 = scalar_lea.vmem [#allocation6], %s255
        // Predicated region
        $region37: #{tpu_custom_call.1} parent=31 // pred_check
          %p257 = pneg %p104
        $region38: #{tpu_custom_call.1} parent=31 // pred_check_branch
          %259 = sbr.rel (%p257) target = $region40
        $region39: #{tpu_custom_call.1} parent=31 // pred_region
          %261 = dma.done %s253, 1024
        $region40: #{tpu_custom_call.1} parent=31 // pred_fallthru
          _
        %s262 = sand.u32 %s61, 1
        %s263 = scalar_lea.sflag [#allocation4], %s262
        %s264 = sand.u32 %s61, 1
        %s265 = smul.addr %s264, 128
        %s266 = scalar_lea.vmem [#allocation3], %s265
        %p267 = pneg %p74
        %p268 = pneg %p71
        %s269 = sand.u32 %s91, 1
        %s270 = scalar_lea.sflag [#allocation7], %s269
        %s271 = sand.u32 %s91, 1
        %s272 = smul.addr %s271, 64
        %s273 = scalar_lea.vmem [#allocation6], %s272
        %p274 = pneg %p104
        %p275 = pneg %p101
        %p276 = scmp.lt.s32.totalorder %s31, 0
        %s277 = scalar_select %p276, %s31, 0
        %s278 = scalar_lea.vmem %s2, %s277
        %p279 = pneg %p130
        %p280 = pneg %p127
        %p281 = pneg %p160
        %p282 = pneg %p157
        %s283 = sand.u32 %s147, 1
        %s284 = scalar_lea.sflag [#allocation5], %s283
        %s285 = sand.u32 %s147, 1
        %s286 = smul.addr %s285, 128
        %s287 = scalar_lea.vmem [#allocation8], %s286
        %s288 = smul.u32 32, %s30
        %s289 = smul.u32 16, %s32
        %p290 = scmp.lt.s32.totalorder %s31, 0
        %s291 = scalar_select %p290, %s31, 0
        %s292 = scalar_lea.vmem %s2, %s291
        %s293 = smul.u32 32, %s30
        %v294 = vld [vmem:[%s246] sm:$0xf]
        %v295 = vld [vmem:[%s246 + $0x4] sm:$0xf]
        %v296 = vld [vmem:[%s246 + $0x8] sm:$0xf]
        %v297 = vld [vmem:[%s246 + $0xc] sm:$0xf]
        %v298 = vld [vmem:[%s246 + $0x10] sm:$0xf]
        %v299 = vld [vmem:[%s246 + $0x14] sm:$0xf]
        %v300 = vld [vmem:[%s246 + $0x18] sm:$0xf]
        %v301 = vld [vmem:[%s246 + $0x1c] sm:$0xf]
        %v302 = vld [vmem:[%s246 + $0x20] sm:$0xf]
        %v303 = vld [vmem:[%s246 + $0x24] sm:$0xf]
        %v304 = vld [vmem:[%s246 + $0x28] sm:$0xf]
        %v305 = vld [vmem:[%s246 + $0x2c] sm:$0xf]
        %v306 = vld [vmem:[%s246 + $0x30] sm:$0xf]
        %v307 = vld [vmem:[%s246 + $0x34] sm:$0xf]
        %v308 = vld [vmem:[%s246 + $0x38] sm:$0xf]
        %v309 = vld [vmem:[%s246 + $0x3c] sm:$0xf]
        %v310 = vld [vmem:[%s246 + $0x40] sm:$0xf]
        %v311 = vld [vmem:[%s246 + $0x44] sm:$0xf]
        %v312 = vld [vmem:[%s246 + $0x48] sm:$0xf]
        %v313 = vld [vmem:[%s246 + $0x4c] sm:$0xf]
        %v314 = vld [vmem:[%s246 + $0x50] sm:$0xf]
        %v315 = vld [vmem:[%s246 + $0x54] sm:$0xf]
        %v316 = vld [vmem:[%s246 + $0x58] sm:$0xf]
        %v317 = vld [vmem:[%s246 + $0x5c] sm:$0xf]
        %v318 = vld [vmem:[%s246 + $0x60] sm:$0xf]
        %v319 = vld [vmem:[%s246 + $0x64] sm:$0xf]
        %v320 = vld [vmem:[%s246 + $0x68] sm:$0xf]
        %v321 = vld [vmem:[%s246 + $0x6c] sm:$0xf]
        %v322 = vld [vmem:[%s246 + $0x70] sm:$0xf]
        %v323 = vld [vmem:[%s246 + $0x74] sm:$0xf]
        %v324 = vld [vmem:[%s246 + $0x78] sm:$0xf]
        %v325 = vld [vmem:[%s246 + $0x7c] sm:$0xf]
        %v326 = vld [vmem:[%s256] sm:$0xf]
        %v327 = vld [vmem:[%s256 + $0x4] sm:$0xf]
        %v328 = vld [vmem:[%s256 + $0x8] sm:$0xf]
        %v329 = vld [vmem:[%s256 + $0xc] sm:$0xf]
        %v330 = vld [vmem:[%s256 + $0x10] sm:$0xf]
        %v331 = vld [vmem:[%s256 + $0x14] sm:$0xf]
        %v332 = vld [vmem:[%s256 + $0x18] sm:$0xf]
        %v333 = vld [vmem:[%s256 + $0x1c] sm:$0xf]
        %v334 = vld [vmem:[%s256 + $0x20] sm:$0xf]
        %v335 = vld [vmem:[%s256 + $0x24] sm:$0xf]
        %v336 = vld [vmem:[%s256 + $0x28] sm:$0xf]
        %v337 = vld [vmem:[%s256 + $0x2c] sm:$0xf]
        %v338 = vld [vmem:[%s256 + $0x30] sm:$0xf]
        %v339 = vld [vmem:[%s256 + $0x34] sm:$0xf]
        %v340 = vld [vmem:[%s256 + $0x38] sm:$0xf]
        %v341 = vld [vmem:[%s256 + $0x3c] sm:$0xf]
        %v374 = vunpack.c.l.b16 %v294
        %v375 = vunpack.c.l.b16 %v295
        %v376 = vunpack.c.l.b16 %v296
        %v377 = vunpack.c.l.b16 %v297
        %v378 = vunpack.c.l.b16 %v298
        %v379 = vunpack.c.l.b16 %v299
        %v380 = vunpack.c.l.b16 %v300
        %v381 = vunpack.c.l.b16 %v301
        %v382 = vunpack.c.l.b16 %v302
        %v383 = vunpack.c.l.b16 %v303
        %v384 = vunpack.c.l.b16 %v304
        %v385 = vunpack.c.l.b16 %v305
        %v386 = vunpack.c.l.b16 %v306
        %v387 = vunpack.c.l.b16 %v307
        %v388 = vunpack.c.l.b16 %v308
        %v389 = vunpack.c.l.b16 %v309
        %v390 = vunpack.c.l.b16 %v310
        %v391 = vunpack.c.l.b16 %v311
        %v392 = vunpack.c.l.b16 %v312
        %v393 = vunpack.c.l.b16 %v313
        %v394 = vunpack.c.l.b16 %v314
        %v395 = vunpack.c.l.b16 %v315
        %v396 = vunpack.c.l.b16 %v316
        %v397 = vunpack.c.l.b16 %v317
        %v398 = vunpack.c.l.b16 %v318
        %v399 = vunpack.c.l.b16 %v319
        %v400 = vunpack.c.l.b16 %v320
        %v401 = vunpack.c.l.b16 %v321
        %v402 = vunpack.c.l.b16 %v322
        %v403 = vunpack.c.l.b16 %v323
        %v404 = vunpack.c.l.b16 %v324
        %v405 = vunpack.c.l.b16 %v325
        %v406 = vpack.c.b16 %v375, %v374
        %v407 = vpack.c.b16 %v377, %v376
        %v408 = vpack.c.b16 %v379, %v378
        %v409 = vpack.c.b16 %v381, %v380
        %v410 = vpack.c.b16 %v383, %v382
        %v411 = vpack.c.b16 %v385, %v384
        %v412 = vpack.c.b16 %v387, %v386
        %v413 = vpack.c.b16 %v389, %v388
        %v414 = vpack.c.b16 %v391, %v390
        %v415 = vpack.c.b16 %v393, %v392
        %v416 = vpack.c.b16 %v395, %v394
        %v417 = vpack.c.b16 %v397, %v396
        %v418 = vpack.c.b16 %v399, %v398
        %v419 = vpack.c.b16 %v401, %v400
        %v420 = vpack.c.b16 %v403, %v402
        %v421 = vpack.c.b16 %v405, %v404
        %v454 = vunpack.c.l.b16 %v326
        %v455 = vunpack.c.l.b16 %v327
        %v456 = vunpack.c.l.b16 %v328
        %v457 = vunpack.c.l.b16 %v329
        %v458 = vunpack.c.l.b16 %v330
        %v459 = vunpack.c.l.b16 %v331
        %v460 = vunpack.c.l.b16 %v332
        %v461 = vunpack.c.l.b16 %v333
        %v462 = vunpack.c.l.b16 %v334
        %v463 = vunpack.c.l.b16 %v335
        %v464 = vunpack.c.l.b16 %v336
        %v465 = vunpack.c.l.b16 %v337
        %v466 = vunpack.c.l.b16 %v338
        %v467 = vunpack.c.l.b16 %v339
        %v468 = vunpack.c.l.b16 %v340
        %v469 = vunpack.c.l.b16 %v341
        %v470 = vpack.c.b16 %v455, %v454
        %v471 = vpack.c.b16 %v457, %v456
        %v472 = vpack.c.b16 %v459, %v458
        %v473 = vpack.c.b16 %v461, %v460
        %v474 = vpack.c.b16 %v463, %v462
        %v475 = vpack.c.b16 %v465, %v464
        %v476 = vpack.c.b16 %v467, %v466
        %v477 = vpack.c.b16 %v469, %v468
        %486 = vmatpush.bf16.msra.mxu0 %v477
        %487 = vmatpush.bf16.msra.mxu0 %v476
        %488 = vmatpush.bf16.msra.mxu0 %v475
        %489 = vmatpush.bf16.msra.mxu0 %v474
        %490 = vmatpush.bf16.msra.mxu0 %v473
        %491 = vmatpush.bf16.msra.mxu0 %v472
        %492 = vmatpush.bf16.msra.mxu0 %v471
        %493 = vmatpush.bf16.msra.mxu0 %v470
        %494 = vmatmul.bf16.gmra.mxu0 %v406
        %v495 = vpop.f32.mrf.mxu0
        %v496 = vadd.f32 0.0, %v495
        %v497 = vpop.f32.mrf.mxu0
        %v498 = vadd.f32 0.0, %v497
        %499 = vmatmul.bf16.gmra.mxu0 %v407
        %v500 = vpop.f32.mrf.mxu0
        %v501 = vadd.f32 0.0, %v500
        %v502 = vpop.f32.mrf.mxu0
        %v503 = vadd.f32 0.0, %v502
        %504 = vmatmul.bf16.gmra.mxu0 %v408
        %v505 = vpop.f32.mrf.mxu0
        %v506 = vadd.f32 0.0, %v505
        %v507 = vpop.f32.mrf.mxu0
        %v508 = vadd.f32 0.0, %v507
        %509 = vmatmul.bf16.gmra.mxu0 %v409
        %v510 = vpop.f32.mrf.mxu0
        %v511 = vadd.f32 0.0, %v510
        %v512 = vpop.f32.mrf.mxu0
        %v513 = vadd.f32 0.0, %v512
        %514 = vmatmul.bf16.gmra.mxu0 %v410
        %v515 = vpop.f32.mrf.mxu0
        %v516 = vadd.f32 0.0, %v515
        %v517 = vpop.f32.mrf.mxu0
        %v518 = vadd.f32 0.0, %v517
        %519 = vmatmul.bf16.gmra.mxu0 %v411
        %v520 = vpop.f32.mrf.mxu0
        %v521 = vadd.f32 0.0, %v520
        %v522 = vpop.f32.mrf.mxu0
        %v523 = vadd.f32 0.0, %v522
        %524 = vmatmul.bf16.gmra.mxu0 %v412
        %v525 = vpop.f32.mrf.mxu0
        %v526 = vadd.f32 0.0, %v525
        %v527 = vpop.f32.mrf.mxu0
        %v528 = vadd.f32 0.0, %v527
        %529 = vmatmul.bf16.gmra.mxu0 %v413
        %v530 = vpop.f32.mrf.mxu0
        %v531 = vadd.f32 0.0, %v530
        %v532 = vpop.f32.mrf.mxu0
        %v533 = vadd.f32 0.0, %v532
        %534 = vmatmul.bf16.gmra.mxu0 %v414
        %v535 = vpop.f32.mrf.mxu0
        %v536 = vadd.f32 0.0, %v535
        %v537 = vpop.f32.mrf.mxu0
        %v538 = vadd.f32 0.0, %v537
        %539 = vmatmul.bf16.gmra.mxu0 %v415
        %v540 = vpop.f32.mrf.mxu0
        %v541 = vadd.f32 0.0, %v540
        %v542 = vpop.f32.mrf.mxu0
        %v543 = vadd.f32 0.0, %v542
        %544 = vmatmul.bf16.gmra.mxu0 %v416
        %v545 = vpop.f32.mrf.mxu0
        %v546 = vadd.f32 0.0, %v545
        %v547 = vpop.f32.mrf.mxu0
        %v548 = vadd.f32 0.0, %v547
        %549 = vmatmul.bf16.gmra.mxu0 %v417
        %v550 = vpop.f32.mrf.mxu0
        %v551 = vadd.f32 0.0, %v550
        %v552 = vpop.f32.mrf.mxu0
        %v553 = vadd.f32 0.0, %v552
        %554 = vmatmul.bf16.gmra.mxu0 %v418
        %v555 = vpop.f32.mrf.mxu0
        %v556 = vadd.f32 0.0, %v555
        %v557 = vpop.f32.mrf.mxu0
        %v558 = vadd.f32 0.0, %v557
        %559 = vmatmul.bf16.gmra.mxu0 %v419
        %v560 = vpop.f32.mrf.mxu0
        %v561 = vadd.f32 0.0, %v560
        %v562 = vpop.f32.mrf.mxu0
        %v563 = vadd.f32 0.0, %v562
        %564 = vmatmul.bf16.gmra.mxu0 %v420
        %v565 = vpop.f32.mrf.mxu0
        %v566 = vadd.f32 0.0, %v565
        %v567 = vpop.f32.mrf.mxu0
        %v568 = vadd.f32 0.0, %v567
        %569 = vmatmul.bf16.gmra.mxu0 %v421
        %v570 = vpop.f32.mrf.mxu0
        %v571 = vadd.f32 0.0, %v570
        %v572 = vpop.f32.mrf.mxu0
        %v573 = vadd.f32 0.0, %v572
        %574 = vdwg.mxu0
        %p575 = scmp.eq.s32.totalorder %s32, 0
        // Predicated region
        $region41: #{tpu_custom_call.1} parent=31 // pred_check
          %p576 = pneg %p575
        $region42: #{tpu_custom_call.1} parent=31 // pred_check_branch
          %578 = sbr.rel (%p576) target = $region44
        $region43: #{tpu_custom_call.1} parent=31 // pred_region
          %579 = vst [vmem:[#allocation2] sm:$0xff] %v496
          %580 = vst [vmem:[#allocation2 + $0x8] sm:$0xff] %v498
          %581 = vst [vmem:[#allocation2 + $0x10] sm:$0xff] %v501
          %582 = vst [vmem:[#allocation2 + $0x18] sm:$0xff] %v503
          %583 = vst [vmem:[#allocation2 + $0x20] sm:$0xff] %v506
          %584 = vst [vmem:[#allocation2 + $0x28] sm:$0xff] %v508
          %585 = vst [vmem:[#allocation2 + $0x30] sm:$0xff] %v511
          %586 = vst [vmem:[#allocation2 + $0x38] sm:$0xff] %v513
          %587 = vst [vmem:[#allocation2 + $0x40] sm:$0xff] %v516
          %588 = vst [vmem:[#allocation2 + $0x48] sm:$0xff] %v518
          %589 = vst [vmem:[#allocation2 + $0x50] sm:$0xff] %v521
          %590 = vst [vmem:[#allocation2 + $0x58] sm:$0xff] %v523
          %591 = vst [vmem:[#allocation2 + $0x60] sm:$0xff] %v526
          %592 = vst [vmem:[#allocation2 + $0x68] sm:$0xff] %v528
          %593 = vst [vmem:[#allocation2 + $0x70] sm:$0xff] %v531
          %594 = vst [vmem:[#allocation2 + $0x78] sm:$0xff] %v533
          %595 = vst [vmem:[#allocation2 + $0x80] sm:$0xff] %v536
          %596 = vst [vmem:[#allocation2 + $0x88] sm:$0xff] %v538
          %597 = vst [vmem:[#allocation2 + $0x90] sm:$0xff] %v541
          %598 = vst [vmem:[#allocation2 + $0x98] sm:$0xff] %v543
          %599 = vst [vmem:[#allocation2 + $0xa0] sm:$0xff] %v546
          %600 = vst [vmem:[#allocation2 + $0xa8] sm:$0xff] %v548
          %601 = vst [vmem:[#allocation2 + $0xb0] sm:$0xff] %v551
          %602 = vst [vmem:[#allocation2 + $0xb8] sm:$0xff] %v553
          %603 = vst [vmem:[#allocation2 + $0xc0] sm:$0xff] %v556
          %604 = vst [vmem:[#allocation2 + $0xc8] sm:$0xff] %v558
          %605 = vst [vmem:[#allocation2 + $0xd0] sm:$0xff] %v561
          %606 = vst [vmem:[#allocation2 + $0xd8] sm:$0xff] %v563
          %607 = vst [vmem:[#allocation2 + $0xe0] sm:$0xff] %v566
          %608 = vst [vmem:[#allocation2 + $0xe8] sm:$0xff] %v568
          %609 = vst [vmem:[#allocation2 + $0xf0] sm:$0xff] %v571
          %610 = vst [vmem:[#allocation2 + $0xf8] sm:$0xff] %v573
        $region44: #{tpu_custom_call.1} parent=31 // pred_fallthru
          _
        %p611 = scmp.gt.s32.totalorder %s32, 0
        // Predicated region
        $region45: #{tpu_custom_call.1} parent=31 // pred_check
          %p612 = pneg %p611
        $region46: #{tpu_custom_call.1} parent=31 // pred_check_branch
          %614 = sbr.rel (%p612) target = $region48
        $region47: #{tpu_custom_call.1} parent=31 // pred_region
          %v615 = vld [vmem:[#allocation2] sm:$0xff]
          %v616 = vld [vmem:[#allocation2 + $0x8] sm:$0xff]
          %v617 = vld [vmem:[#allocation2 + $0x10] sm:$0xff]
          %v618 = vld [vmem:[#allocation2 + $0x18] sm:$0xff]
          %v619 = vld [vmem:[#allocation2 + $0x20] sm:$0xff]
          %v620 = vld [vmem:[#allocation2 + $0x28] sm:$0xff]
          %v621 = vld [vmem:[#allocation2 + $0x30] sm:$0xff]
          %v622 = vld [vmem:[#allocation2 + $0x38] sm:$0xff]
          %v623 = vld [vmem:[#allocation2 + $0x40] sm:$0xff]
          %v624 = vld [vmem:[#allocation2 + $0x48] sm:$0xff]
          %v625 = vld [vmem:[#allocation2 + $0x50] sm:$0xff]
          %v626 = vld [vmem:[#allocation2 + $0x58] sm:$0xff]
          %v627 = vld [vmem:[#allocation2 + $0x60] sm:$0xff]
          %v628 = vld [vmem:[#allocation2 + $0x68] sm:$0xff]
          %v629 = vld [vmem:[#allocation2 + $0x70] sm:$0xff]
          %v630 = vld [vmem:[#allocation2 + $0x78] sm:$0xff]
          %v631 = vld [vmem:[#allocation2 + $0x80] sm:$0xff]
          %v632 = vld [vmem:[#allocation2 + $0x88] sm:$0xff]
          %v633 = vld [vmem:[#allocation2 + $0x90] sm:$0xff]
          %v634 = vld [vmem:[#allocation2 + $0x98] sm:$0xff]
          %v635 = vld [vmem:[#allocation2 + $0xa0] sm:$0xff]
          %v636 = vld [vmem:[#allocation2 + $0xa8] sm:$0xff]
          %v637 = vld [vmem:[#allocation2 + $0xb0] sm:$0xff]
          %v638 = vld [vmem:[#allocation2 + $0xb8] sm:$0xff]
          %v639 = vld [vmem:[#allocation2 + $0xc0] sm:$0xff]
          %v640 = vld [vmem:[#allocation2 + $0xc8] sm:$0xff]
          %v641 = vld [vmem:[#allocation2 + $0xd0] sm:$0xff]
          %v642 = vld [vmem:[#allocation2 + $0xd8] sm:$0xff]
          %v643 = vld [vmem:[#allocation2 + $0xe0] sm:$0xff]
          %v644 = vld [vmem:[#allocation2 + $0xe8] sm:$0xff]
          %v645 = vld [vmem:[#allocation2 + $0xf0] sm:$0xff]
          %v646 = vld [vmem:[#allocation2 + $0xf8] sm:$0xff]
          %v647 = vadd.f32 %v615, %v496
          %v648 = vadd.f32 %v616, %v498
          %v649 = vadd.f32 %v617, %v501
          %v650 = vadd.f32 %v618, %v503
          %v651 = vadd.f32 %v619, %v506
          %v652 = vadd.f32 %v620, %v508
          %v653 = vadd.f32 %v621, %v511
          %v654 = vadd.f32 %v622, %v513
          %v655 = vadd.f32 %v623, %v516
          %v656 = vadd.f32 %v624, %v518
          %v657 = vadd.f32 %v625, %v521
          %v658 = vadd.f32 %v626, %v523
          %v659 = vadd.f32 %v627, %v526
          %v660 = vadd.f32 %v628, %v528
          %v661 = vadd.f32 %v629, %v531
          %v662 = vadd.f32 %v630, %v533
          %v663 = vadd.f32 %v631, %v536
          %v664 = vadd.f32 %v632, %v538
          %v665 = vadd.f32 %v633, %v541
          %v666 = vadd.f32 %v634, %v543
          %v667 = vadd.f32 %v635, %v546
          %v668 = vadd.f32 %v636, %v548
          %v669 = vadd.f32 %v637, %v551
          %v670 = vadd.f32 %v638, %v553
          %v671 = vadd.f32 %v639, %v556
          %v672 = vadd.f32 %v640, %v558
          %v673 = vadd.f32 %v641, %v561
          %v674 = vadd.f32 %v642, %v563
          %v675 = vadd.f32 %v643, %v566
          %v676 = vadd.f32 %v644, %v568
          %v677 = vadd.f32 %v645, %v571
          %v678 = vadd.f32 %v646, %v573
          %679 = vst [vmem:[#allocation2] sm:$0xff] %v647
          %680 = vst [vmem:[#allocation2 + $0x8] sm:$0xff] %v648
          %681 = vst [vmem:[#allocation2 + $0x10] sm:$0xff] %v649
          %682 = vst [vmem:[#allocation2 + $0x18] sm:$0xff] %v650
          %683 = vst [vmem:[#allocation2 + $0x20] sm:$0xff] %v651
          %684 = vst [vmem:[#allocation2 + $0x28] sm:$0xff] %v652
          %685 = vst [vmem:[#allocation2 + $0x30] sm:$0xff] %v653
          %686 = vst [vmem:[#allocation2 + $0x38] sm:$0xff] %v654
          %687 = vst [vmem:[#allocation2 + $0x40] sm:$0xff] %v655
          %688 = vst [vmem:[#allocation2 + $0x48] sm:$0xff] %v656
          %689 = vst [vmem:[#allocation2 + $0x50] sm:$0xff] %v657
          %690 = vst [vmem:[#allocation2 + $0x58] sm:$0xff] %v658
          %691 = vst [vmem:[#allocation2 + $0x60] sm:$0xff] %v659
          %692 = vst [vmem:[#allocation2 + $0x68] sm:$0xff] %v660
          %693 = vst [vmem:[#allocation2 + $0x70] sm:$0xff] %v661
          %694 = vst [vmem:[#allocation2 + $0x78] sm:$0xff] %v662
          %695 = vst [vmem:[#allocation2 + $0x80] sm:$0xff] %v663
          %696 = vst [vmem:[#allocation2 + $0x88] sm:$0xff] %v664
          %697 = vst [vmem:[#allocation2 + $0x90] sm:$0xff] %v665
          %698 = vst [vmem:[#allocation2 + $0x98] sm:$0xff] %v666
          %699 = vst [vmem:[#allocation2 + $0xa0] sm:$0xff] %v667
          %700 = vst [vmem:[#allocation2 + $0xa8] sm:$0xff] %v668
          %701 = vst [vmem:[#allocation2 + $0xb0] sm:$0xff] %v669
          %702 = vst [vmem:[#allocation2 + $0xb8] sm:$0xff] %v670
          %703 = vst [vmem:[#allocation2 + $0xc0] sm:$0xff] %v671
          %704 = vst [vmem:[#allocation2 + $0xc8] sm:$0xff] %v672
          %705 = vst [vmem:[#allocation2 + $0xd0] sm:$0xff] %v673
          %706 = vst [vmem:[#allocation2 + $0xd8] sm:$0xff] %v674
          %707 = vst [vmem:[#allocation2 + $0xe0] sm:$0xff] %v675
          %708 = vst [vmem:[#allocation2 + $0xe8] sm:$0xff] %v676
          %709 = vst [vmem:[#allocation2 + $0xf0] sm:$0xff] %v677
          %710 = vst [vmem:[#allocation2 + $0xf8] sm:$0xff] %v678
        $region48: #{tpu_custom_call.1} parent=31 // pred_fallthru
          _
        // Predicated region
        $region49: #{tpu_custom_call.1} parent=31 // pred_check
          %p711 = pneg %p575
        $region50: #{tpu_custom_call.1} parent=31 // pred_check_branch
          %713 = sbr.rel (%p711) target = $region52
        $region51: #{tpu_custom_call.1} parent=31 // pred_region
          %v714 = vld [vmem:[#allocation2] sm:$0xff]
          %v715 = vld [vmem:[#allocation2 + $0x8] sm:$0xff]
          %v716 = vld [vmem:[#allocation2 + $0x10] sm:$0xff]
          %v717 = vld [vmem:[#allocation2 + $0x18] sm:$0xff]
          %v718 = vld [vmem:[#allocation2 + $0x20] sm:$0xff]
          %v719 = vld [vmem:[#allocation2 + $0x28] sm:$0xff]
          %v720 = vld [vmem:[#allocation2 + $0x30] sm:$0xff]
          %v721 = vld [vmem:[#allocation2 + $0x38] sm:$0xff]
          %v722 = vld [vmem:[#allocation2 + $0x40] sm:$0xff]
          %v723 = vld [vmem:[#allocation2 + $0x48] sm:$0xff]
          %v724 = vld [vmem:[#allocation2 + $0x50] sm:$0xff]
          %v725 = vld [vmem:[#allocation2 + $0x58] sm:$0xff]
          %v726 = vld [vmem:[#allocation2 + $0x60] sm:$0xff]
          %v727 = vld [vmem:[#allocation2 + $0x68] sm:$0xff]
          %v728 = vld [vmem:[#allocation2 + $0x70] sm:$0xff]
          %v729 = vld [vmem:[#allocation2 + $0x78] sm:$0xff]
          %v730 = vld [vmem:[#allocation2 + $0x80] sm:$0xff]
          %v731 = vld [vmem:[#allocation2 + $0x88] sm:$0xff]
          %v732 = vld [vmem:[#allocation2 + $0x90] sm:$0xff]
          %v733 = vld [vmem:[#allocation2 + $0x98] sm:$0xff]
          %v734 = vld [vmem:[#allocation2 + $0xa0] sm:$0xff]
          %v735 = vld [vmem:[#allocation2 + $0xa8] sm:$0xff]
          %v736 = vld [vmem:[#allocation2 + $0xb0] sm:$0xff]
          %v737 = vld [vmem:[#allocation2 + $0xb8] sm:$0xff]
          %v738 = vld [vmem:[#allocation2 + $0xc0] sm:$0xff]
          %v739 = vld [vmem:[#allocation2 + $0xc8] sm:$0xff]
          %v740 = vld [vmem:[#allocation2 + $0xd0] sm:$0xff]
          %v741 = vld [vmem:[#allocation2 + $0xd8] sm:$0xff]
          %v742 = vld [vmem:[#allocation2 + $0xe0] sm:$0xff]
          %v743 = vld [vmem:[#allocation2 + $0xe8] sm:$0xff]
          %v744 = vld [vmem:[#allocation2 + $0xf0] sm:$0xff]
          %v745 = vld [vmem:[#allocation2 + $0xf8] sm:$0xff]
          %v746 = vld [vmem:[%s292] sm:$0x1]
          %v748 = vperm.slane %v746, 0
          %v750 = vadd.f32 %v714, %v748
          %v751 = vadd.f32 %v715, %v748
          %v752 = vadd.f32 %v716, %v748
          %v753 = vadd.f32 %v717, %v748
          %v754 = vadd.f32 %v718, %v748
          %v755 = vadd.f32 %v719, %v748
          %v756 = vadd.f32 %v720, %v748
          %v757 = vadd.f32 %v721, %v748
          %v758 = vadd.f32 %v722, %v748
          %v759 = vadd.f32 %v723, %v748
          %v760 = vadd.f32 %v724, %v748
          %v761 = vadd.f32 %v725, %v748
          %v762 = vadd.f32 %v726, %v748
          %v763 = vadd.f32 %v727, %v748
          %v764 = vadd.f32 %v728, %v748
          %v765 = vadd.f32 %v729, %v748
          %v766 = vadd.f32 %v730, %v748
          %v767 = vadd.f32 %v731, %v748
          %v768 = vadd.f32 %v732, %v748
          %v769 = vadd.f32 %v733, %v748
          %v770 = vadd.f32 %v734, %v748
          %v771 = vadd.f32 %v735, %v748
          %v772 = vadd.f32 %v736, %v748
          %v773 = vadd.f32 %v737, %v748
          %v774 = vadd.f32 %v738, %v748
          %v775 = vadd.f32 %v739, %v748
          %v776 = vadd.f32 %v740, %v748
          %v777 = vadd.f32 %v741, %v748
          %v778 = vadd.f32 %v742, %v748
          %v779 = vadd.f32 %v743, %v748
          %v780 = vadd.f32 %v744, %v748
          %v781 = vadd.f32 %v745, %v748
          %vm782 = vcmp.ge.f32.partialorder %v750, 0.0
          %vm783 = vcmp.ge.f32.partialorder %v751, 0.0
          %vm784 = vcmp.ge.f32.partialorder %v752, 0.0
          %vm785 = vcmp.ge.f32.partialorder %v753, 0.0
          %vm786 = vcmp.ge.f32.partialorder %v754, 0.0
          %vm787 = vcmp.ge.f32.partialorder %v755, 0.0
          %vm788 = vcmp.ge.f32.partialorder %v756, 0.0
          %vm789 = vcmp.ge.f32.partialorder %v757, 0.0
          %vm790 = vcmp.ge.f32.partialorder %v758, 0.0
          %vm791 = vcmp.ge.f32.partialorder %v759, 0.0
          %vm792 = vcmp.ge.f32.partialorder %v760, 0.0
          %vm793 = vcmp.ge.f32.partialorder %v761, 0.0
          %vm794 = vcmp.ge.f32.partialorder %v762, 0.0
          %vm795 = vcmp.ge.f32.partialorder %v763, 0.0
          %vm796 = vcmp.ge.f32.partialorder %v764, 0.0
          %vm797 = vcmp.ge.f32.partialorder %v765, 0.0
          %vm798 = vcmp.ge.f32.partialorder %v766, 0.0
          %vm799 = vcmp.ge.f32.partialorder %v767, 0.0
          %vm800 = vcmp.ge.f32.partialorder %v768, 0.0
          %vm801 = vcmp.ge.f32.partialorder %v769, 0.0
          %vm802 = vcmp.ge.f32.partialorder %v770, 0.0
          %vm803 = vcmp.ge.f32.partialorder %v771, 0.0
          %vm804 = vcmp.ge.f32.partialorder %v772, 0.0
          %vm805 = vcmp.ge.f32.partialorder %v773, 0.0
          %vm806 = vcmp.ge.f32.partialorder %v774, 0.0
          %vm807 = vcmp.ge.f32.partialorder %v775, 0.0
          %vm808 = vcmp.ge.f32.partialorder %v776, 0.0
          %vm809 = vcmp.ge.f32.partialorder %v777, 0.0
          %vm810 = vcmp.ge.f32.partialorder %v778, 0.0
          %vm811 = vcmp.ge.f32.partialorder %v779, 0.0
          %vm812 = vcmp.ge.f32.partialorder %v780, 0.0
          %vm813 = vcmp.ge.f32.partialorder %v781, 0.0
          %v814 = vsel %vm782, 1.4142135, 0.28284273
          %v815 = vsel %vm783, 1.4142135, 0.28284273
          %v816 = vsel %vm784, 1.4142135, 0.28284273
          %v817 = vsel %vm785, 1.4142135, 0.28284273
          %v818 = vsel %vm786, 1.4142135, 0.28284273
          %v819 = vsel %vm787, 1.4142135, 0.28284273
          %v820 = vsel %vm788, 1.4142135, 0.28284273
          %v821 = vsel %vm789, 1.4142135, 0.28284273
          %v822 = vsel %vm790, 1.4142135, 0.28284273
          %v823 = vsel %vm791, 1.4142135, 0.28284273
          %v824 = vsel %vm792, 1.4142135, 0.28284273
          %v825 = vsel %vm793, 1.4142135, 0.28284273
          %v826 = vsel %vm794, 1.4142135, 0.28284273
          %v827 = vsel %vm795, 1.4142135, 0.28284273
          %v828 = vsel %vm796, 1.4142135, 0.28284273
          %v829 = vsel %vm797, 1.4142135, 0.28284273
          %v830 = vsel %vm798, 1.4142135, 0.28284273
          %v831 = vsel %vm799, 1.4142135, 0.28284273
          %v832 = vsel %vm800, 1.4142135, 0.28284273
          %v833 = vsel %vm801, 1.4142135, 0.28284273
          %v834 = vsel %vm802, 1.4142135, 0.28284273
          %v835 = vsel %vm803, 1.4142135, 0.28284273
          %v836 = vsel %vm804, 1.4142135, 0.28284273
          %v837 = vsel %vm805, 1.4142135, 0.28284273
          %v838 = vsel %vm806, 1.4142135, 0.28284273
          %v839 = vsel %vm807, 1.4142135, 0.28284273
          %v840 = vsel %vm808, 1.4142135, 0.28284273
          %v841 = vsel %vm809, 1.4142135, 0.28284273
          %v842 = vsel %vm810, 1.4142135, 0.28284273
          %v843 = vsel %vm811, 1.4142135, 0.28284273
          %v844 = vsel %vm812, 1.4142135, 0.28284273
          %v845 = vsel %vm813, 1.4142135, 0.28284273
          %v846 = vmul.f32 %v750, %v814
          %v847 = vmul.f32 %v751, %v815
          %v848 = vmul.f32 %v752, %v816
          %v849 = vmul.f32 %v753, %v817
          %v850 = vmul.f32 %v754, %v818
          %v851 = vmul.f32 %v755, %v819
          %v852 = vmul.f32 %v756, %v820
          %v853 = vmul.f32 %v757, %v821
          %v854 = vmul.f32 %v758, %v822
          %v855 = vmul.f32 %v759, %v823
          %v856 = vmul.f32 %v760, %v824
          %v857 = vmul.f32 %v761, %v825
          %v858 = vmul.f32 %v762, %v826
          %v859 = vmul.f32 %v763, %v827
          %v860 = vmul.f32 %v764, %v828
          %v861 = vmul.f32 %v765, %v829
          %v862 = vmul.f32 %v766, %v830
          %v863 = vmul.f32 %v767, %v831
          %v864 = vmul.f32 %v768, %v832
          %v865 = vmul.f32 %v769, %v833
          %v866 = vmul.f32 %v770, %v834
          %v867 = vmul.f32 %v771, %v835
          %v868 = vmul.f32 %v772, %v836
          %v869 = vmul.f32 %v773, %v837
          %v870 = vmul.f32 %v774, %v838
          %v871 = vmul.f32 %v775, %v839
          %v872 = vmul.f32 %v776, %v840
          %v873 = vmul.f32 %v777, %v841
          %v874 = vmul.f32 %v778, %v842
          %v875 = vmul.f32 %v779, %v843
          %v876 = vmul.f32 %v780, %v844
          %v877 = vmul.f32 %v781, %v845
          %v878 = vpack.c.bf16 %v846, %v846
          %v879 = vpack.c.bf16 %v847, %v847
          %v880 = vpack.c.bf16 %v848, %v848
          %v881 = vpack.c.bf16 %v849, %v849
          %v882 = vpack.c.bf16 %v850, %v850
          %v883 = vpack.c.bf16 %v851, %v851
          %v884 = vpack.c.bf16 %v852, %v852
          %v885 = vpack.c.bf16 %v853, %v853
          %v886 = vpack.c.bf16 %v854, %v854
          %v887 = vpack.c.bf16 %v855, %v855
          %v888 = vpack.c.bf16 %v856, %v856
          %v889 = vpack.c.bf16 %v857, %v857
          %v890 = vpack.c.bf16 %v858, %v858
          %v891 = vpack.c.bf16 %v859, %v859
          %v892 = vpack.c.bf16 %v860, %v860
          %v893 = vpack.c.bf16 %v861, %v861
          %v894 = vpack.c.bf16 %v862, %v862
          %v895 = vpack.c.bf16 %v863, %v863
          %v896 = vpack.c.bf16 %v864, %v864
          %v897 = vpack.c.bf16 %v865, %v865
          %v898 = vpack.c.bf16 %v866, %v866
          %v899 = vpack.c.bf16 %v867, %v867
          %v900 = vpack.c.bf16 %v868, %v868
          %v901 = vpack.c.bf16 %v869, %v869
          %v902 = vpack.c.bf16 %v870, %v870
          %v903 = vpack.c.bf16 %v871, %v871
          %v904 = vpack.c.bf16 %v872, %v872
          %v905 = vpack.c.bf16 %v873, %v873
          %v906 = vpack.c.bf16 %v874, %v874
          %v907 = vpack.c.bf16 %v875, %v875
          %v908 = vpack.c.bf16 %v876, %v876
          %v909 = vpack.c.bf16 %v877, %v877
          %910 = vst [vmem:[%s287] sm:$0xf] %v878
          %911 = vst [vmem:[%s287 + $0x4] sm:$0xf] %v879
          %912 = vst [vmem:[%s287 + $0x8] sm:$0xf] %v880
          %913 = vst [vmem:[%s287 + $0xc] sm:$0xf] %v881
          %914 = vst [vmem:[%s287 + $0x10] sm:$0xf] %v882
          %915 = vst [vmem:[%s287 + $0x14] sm:$0xf] %v883
          %916 = vst [vmem:[%s287 + $0x18] sm:$0xf] %v884
          %917 = vst [vmem:[%s287 + $0x1c] sm:$0xf] %v885
          %918 = vst [vmem:[%s287 + $0x20] sm:$0xf] %v886
          %919 = vst [vmem:[%s287 + $0x24] sm:$0xf] %v887
          %920 = vst [vmem:[%s287 + $0x28] sm:$0xf] %v888
          %921 = vst [vmem:[%s287 + $0x2c] sm:$0xf] %v889
          %922 = vst [vmem:[%s287 + $0x30] sm:$0xf] %v890
          %923 = vst [vmem:[%s287 + $0x34] sm:$0xf] %v891
          %924 = vst [vmem:[%s287 + $0x38] sm:$0xf] %v892
          %925 = vst [vmem:[%s287 + $0x3c] sm:$0xf] %v893
          %926 = vst [vmem:[%s287 + $0x40] sm:$0xf] %v894
          %927 = vst [vmem:[%s287 + $0x44] sm:$0xf] %v895
          %928 = vst [vmem:[%s287 + $0x48] sm:$0xf] %v896
          %929 = vst [vmem:[%s287 + $0x4c] sm:$0xf] %v897
          %930 = vst [vmem:[%s287 + $0x50] sm:$0xf] %v898
          %931 = vst [vmem:[%s287 + $0x54] sm:$0xf] %v899
          %932 = vst [vmem:[%s287 + $0x58] sm:$0xf] %v900
          %933 = vst [vmem:[%s287 + $0x5c] sm:$0xf] %v901
          %934 = vst [vmem:[%s287 + $0x60] sm:$0xf] %v902
          %935 = vst [vmem:[%s287 + $0x64] sm:$0xf] %v903
          %936 = vst [vmem:[%s287 + $0x68] sm:$0xf] %v904
          %937 = vst [vmem:[%s287 + $0x6c] sm:$0xf] %v905
          %938 = vst [vmem:[%s287 + $0x70] sm:$0xf] %v906
          %939 = vst [vmem:[%s287 + $0x74] sm:$0xf] %v907
          %940 = vst [vmem:[%s287 + $0x78] sm:$0xf] %v908
          %941 = vst [vmem:[%s287 + $0x7c] sm:$0xf] %v909
        $region52: #{tpu_custom_call.1} parent=31 // pred_fallthru
          _
        %s942 = sand.u32 %s147, 1
        %s943 = scalar_lea.sflag [#allocation5], %s942
        %s944 = sand.u32 %s147, 1
        %s945 = smul.addr %s944, 128
        %s946 = scalar_lea.vmem [#allocation8], %s945
        // Predicated region
        $region53: #{tpu_custom_call.1} parent=31 // pred_check
          %p947 = pneg %p157
        $region54: #{tpu_custom_call.1} parent=31 // pred_check_branch
          %949 = sbr.rel (%p947) target = $region56
        $region55: #{tpu_custom_call.1} parent=31 // pred_region
          %s950 = smul.u32 32, %s30
          %952 = vsyncadd %s943, 0
          %s953 = sadd.s32 %s31, %s950
          %s954 = smul.addr %s29, 32
          %s955 = sadd.s32 %s953, %s954
          %s956 = smul.addr %s955, 4
          %s957 = scalar_lea.hbm %s3, %s956
          %s958 = sshll.u32 %s946, 4
          %s959 = int_to_ptr.vmem [resolvable:$true] %s958
          %s960 = sshll.u32 %s957, 4
          %s961 = int_to_ptr.hbm [resolvable:$true] %s960
          %966 = dma.vmem_to_hbm [thread:$0]  %s959, 2048, %s961, %s943, 64, 64, 4
        $region56: #{tpu_custom_call.1} parent=31 // pred_fallthru
          _
      $region32: #{tpu_custom_call.1} parent=5 // pred_fallthru
        _
      %p967 = scmp.le.s32.totalorder 2, %s18
      // Predicated region
      $region57: #{tpu_custom_call.1} parent=5 // pred_check
        %p968 = pneg %p967
      $region58: #{tpu_custom_call.1} parent=5 // pred_check_branch
        %970 = sbr.rel (%p968) target = $region60
      $region59: #{tpu_custom_call.1} parent=5 // pred_region
        %s971 = ssub.s32 %s18, 2
        // Predicated region
        $region61: #{tpu_custom_call.1} parent=59 // pred_check
          %p972 = pneg %p163
        $region62: #{tpu_custom_call.1} parent=59 // pred_check_branch
          %974 = sbr.rel (%p972) target = $region64
        $region63: #{tpu_custom_call.1} parent=59 // pred_region
          %s975 = sand.u32 %s148, 1
          %s976 = scalar_lea.sflag [#allocation5], %s975
          %s977 = sand.u32 %s148, 1
          %s978 = smul.addr %s977, 128
          %s979 = scalar_lea.vmem [#allocation8], %s978
          %981 = dma.done %s976, 2048
        $region64: #{tpu_custom_call.1} parent=59 // pred_fallthru
          _
      $region60: #{tpu_custom_call.1} parent=5 // pred_fallthru
        _
    $region6: #{tpu_custom_call.1} parent=1 // loop_footer
      %s22 = sadd.s32 1, %s18
    $region7: #{tpu_custom_call.1} parent=1 // loop_footer_branch
      %17 = sbr.rel target = $region3
    $region8: #{tpu_custom_call.1} parent=1 // loop_exit
      _
    %982 = vsyncpa [#allocation4], 1
    %s983 = scalar_lea.sflag [#allocation4], 1
    %984 = vsyncpa %s983, 1
    %985 = vsyncpa [#allocation7], 1
    %s986 = scalar_lea.sflag [#allocation7], 1
    %987 = vsyncpa %s986, 1
    %988 = vsyncpa [#allocation5], 1
    %s989 = scalar_lea.sflag [#allocation5], 1
    %990 = vsyncpa %s989, 1

</llo_original>
